<compile_context>
chip_gen: v7x
topology: tpu7x:2x2x1
jax: 0.10.0
libtpu: 0.0.40
codegen_flags: <defaults>
</compile_context>

<pallas_src>
import functools

import jax
import jax.numpy as jnp
from jax.experimental import pallas as pl
from jax.experimental.pallas import tpu as pltpu


def _classifier_kernel(ct_ref, x_ref, tbl_ref, w_ref, b_ref, o_ref, *, mxu_dtype):
    # ct_ref: (TB, 1) i32 ; x_ref: (TB, D) f32 ; tbl_ref: (4, D) f32
    # w_ref:  (D, TN) mxu_dtype ; b_ref: (1, TN) f32 ; o_ref: (TB, TN)
    x = x_ref[...]
    ct = ct_ref[...]                      # (TB, 1)
    tbl = tbl_ref[...]                    # (4, D)

    # 4-way in-kernel embedding select (broadcast (TB,1) cond against (1,D) rows).
    emb = jnp.where(
        ct == 0, tbl[0:1, :],
        jnp.where(ct == 1, tbl[1:2, :],
                  jnp.where(ct == 2, tbl[2:3, :], tbl[3:4, :])))

    # Elementwise path in f32 (v5e has no bf16 VPU); cast only the MXU operand.
    act = jnp.maximum(x * emb, 0.0)

    out = jnp.dot(act.astype(mxu_dtype), w_ref[...],
                  preferred_element_type=jnp.float32)
    o_ref[...] = (out + b_ref[...]).astype(o_ref.dtype)


def _pick_tile(total, preferred):
    """Largest convenient tile: full extent if small, else 256/128 divisor."""
    if total <= preferred:
        return total
    for t in (preferred, 128):
        if total % t == 0:
            return t
    return total


def contrastive_classifier_forward(x, cell_types, emb_table, fc_w_t, fc_b, *,
                                   tb=None, tn=None, mxu_dtype=jnp.bfloat16):
    """x: (B, D) f32, cell_types: (B,) int, emb_table: (4, D) f32,
    fc_w_t: (D, N) (transposed PyTorch fc.weight), fc_b: (N,) f32."""
    B, D = x.shape
    N = fc_w_t.shape[1]

    tb = tb if tb is not None else _pick_tile(B, 256)   # 256 rows ≈ full MXU M on v6e/v7x
    tn = tn if tn is not None else _pick_tile(N, 256)   # 256 cols feeds full MXU width
    assert B % tb == 0 and N % tn == 0

    ct2d = cell_types.reshape(B, 1).astype(jnp.int32)
    bias2d = fc_b.reshape(1, N).astype(jnp.float32)
    w = fc_w_t.astype(mxu_dtype)          # half the weight HBM traffic vs f32
    tbl = emb_table.astype(jnp.float32)

    grid = (B // tb, N // tn)             # batch outer, classes inner
    kernel = functools.partial(_classifier_kernel, mxu_dtype=mxu_dtype)

    return pl.pallas_call(
        kernel,
        out_shape=jax.ShapeDtypeStruct((B, N), x.dtype),
        grid_spec=pltpu.PrefetchScalarGridSpec(
            num_scalar_prefetch=0,
            grid=grid,
            in_specs=[
                pl.BlockSpec((tb, 1), lambda i, j: (i, 0)),   # cell_types (per batch tile)
                pl.BlockSpec((tb, D), lambda i, j: (i, 0)),   # x          (per batch tile)
                pl.BlockSpec((4, D), lambda i, j: (0, 0)),    # embedding table (resident)
                pl.BlockSpec((D, tn), lambda i, j: (0, j)),   # fc weight tile
                pl.BlockSpec((1, tn), lambda i, j: (0, j)),   # fc bias tile
            ],
            out_specs=pl.BlockSpec((tb, tn), lambda i, j: (i, j)),
        ),
        compiler_params=pltpu.CompilerParams(
            dimension_semantics=("parallel", "parallel"),
        ),
    )(ct2d, x, tbl, w, bias2d)


if __name__ == "__main__":
    # Small shapes consistent with the module (emb_dim/n_classes scaled down).
    B, D, N = 16, 128, 256

    key = jax.random.PRNGKey(0)
    k_x, k_emb, k_w, k_b, k_ct = jax.random.split(key, 5)

    x = jax.random.normal(k_x, (B, D), dtype=jnp.float32)
    cell_types = jax.random.randint(k_ct, (B,), 0, 4, dtype=jnp.int32)

    emb_table = jax.random.normal(k_emb, (4, D), dtype=jnp.float32)
    fc_weight = jax.random.normal(k_w, (N, D), dtype=jnp.float32) * 0.05  # PyTorch (out, in)
    fc_bias = jax.random.normal(k_b, (N,), dtype=jnp.float32) * 0.05
    fc_w_t = fc_weight.T                                                  # (D, N)

    out = contrastive_classifier_forward(x, cell_types, emb_table, fc_w_t, fc_bias)
    out = jax.block_until_ready(out)
    assert out.shape == (B, N)

    # Reference with matching numerics (bf16 MXU operands, f32 accumulate).
    emb = emb_table[cell_types]
    act = jnp.maximum(x * emb, 0.0)
    ref_bf16 = jnp.dot(act.astype(jnp.bfloat16), fc_w_t.astype(jnp.bfloat16),
                       preferred_element_type=jnp.float32) + fc_bias
    assert jnp.allclose(out, ref_bf16, atol=1e-2, rtol=1e-2)

    # Module-semantics (full f32) sanity check with a bf16-sized tolerance.
    ref_f32 = act @ fc_w_t + fc_bias
    assert jnp.allclose(out, ref_f32, atol=5e-2, rtol=5e-2)

    print("KERNEL_OK")
</pallas_src>

<mosaic_0001>
module attributes {stable_mosaic.version = 11 : i64} {
  func.func @_classifier_kernel(%arg0: i32, %arg1: i32, %arg2: memref<16x1xi32, #tpu.memory_space<vmem>>, %arg3: memref<16x128xf32, #tpu.memory_space<vmem>>, %arg4: memref<4x128xf32, #tpu.memory_space<vmem>>, %arg5: memref<128x256xbf16, #tpu.memory_space<vmem>>, %arg6: memref<1x256xf32, #tpu.memory_space<vmem>>, %arg7: memref<16x256xf32, #tpu.memory_space<vmem>>) attributes {dimension_semantics = [#tpu.dimension_semantics<parallel>, #tpu.dimension_semantics<parallel>], iteration_bounds = array<i64: 1, 1>, scalar_prefetch = 0 : i64, scratch_operands = 0 : i64, tpu.core_type = #tpu.core_type<tc>, window_params = [{transform_indices = @transform_0, window_bounds = array<i64: 16, 1>}, {transform_indices = @transform_1, window_bounds = array<i64: 16, 128>}, {pipeline_mode = #tpu.pipeline_mode<synchronous>, transform_indices = @transform_2, window_bounds = array<i64: 4, 128>}, {transform_indices = @transform_3, window_bounds = array<i64: 128, 256>}, {transform_indices = @transform_4, window_bounds = array<i64: 1, 256>}, {transform_indices = @transform_5, window_bounds = array<i64: 16, 256>}]} {
    %c0 = arith.constant 0 : index
    %c0_0 = arith.constant 0 : index
    %0 = vector.load %arg3[%c0, %c0_0] : memref<16x128xf32, #tpu.memory_space<vmem>>, vector<16x128xf32>
    %c0_1 = arith.constant 0 : index
    %c0_2 = arith.constant 0 : index
    %1 = vector.load %arg2[%c0_1, %c0_2] : memref<16x1xi32, #tpu.memory_space<vmem>>, vector<16x1xi32>
    %c0_3 = arith.constant 0 : index
    %c0_4 = arith.constant 0 : index
    %2 = vector.load %arg4[%c0_3, %c0_4] : memref<4x128xf32, #tpu.memory_space<vmem>>, vector<4x128xf32>
    %c0_i32 = arith.constant 0 : i32
    %3 = vector.broadcast %c0_i32 : i32 to vector<16x1xi32>
    %4 = arith.cmpi eq, %1, %3 : vector<16x1xi32>
    %5 = vector.extract_strided_slice %2 {offsets = [0, 0], sizes = [1, 128], strides = [1, 1]} : vector<4x128xf32> to vector<1x128xf32>
    %c1_i32 = arith.constant 1 : i32
    %6 = vector.broadcast %c1_i32 : i32 to vector<16x1xi32>
    %7 = arith.cmpi eq, %1, %6 : vector<16x1xi32>
    %8 = vector.extract_strided_slice %2 {offsets = [1, 0], sizes = [1, 128], strides = [1, 1]} : vector<4x128xf32> to vector<1x128xf32>
    %c2_i32 = arith.constant 2 : i32
    %9 = vector.broadcast %c2_i32 : i32 to vector<16x1xi32>
    %10 = arith.cmpi eq, %1, %9 : vector<16x1xi32>
    %11 = vector.extract_strided_slice %2 {offsets = [2, 0], sizes = [1, 128], strides = [1, 1]} : vector<4x128xf32> to vector<1x128xf32>
    %12 = vector.extract_strided_slice %2 {offsets = [3, 0], sizes = [1, 128], strides = [1, 1]} : vector<4x128xf32> to vector<1x128xf32>
    %13 = vector.shape_cast %10 : vector<16x1xi1> to vector<16x1xi1>
    %14 = vector.broadcast %13 : vector<16x1xi1> to vector<16x128xi1>
    %15 = vector.shape_cast %11 : vector<1x128xf32> to vector<1x128xf32>
    %16 = vector.broadcast %15 : vector<1x128xf32> to vector<16x128xf32>
    %17 = vector.shape_cast %12 : vector<1x128xf32> to vector<1x128xf32>
    %18 = vector.broadcast %17 : vector<1x128xf32> to vector<16x128xf32>
    %19 = arith.select %14, %16, %18 : vector<16x128xi1>, vector<16x128xf32>
    %20 = vector.shape_cast %7 : vector<16x1xi1> to vector<16x1xi1>
    %21 = vector.broadcast %20 : vector<16x1xi1> to vector<16x128xi1>
    %22 = vector.shape_cast %8 : vector<1x128xf32> to vector<1x128xf32>
    %23 = vector.broadcast %22 : vector<1x128xf32> to vector<16x128xf32>
    %24 = arith.select %21, %23, %19 : vector<16x128xi1>, vector<16x128xf32>
    %25 = vector.shape_cast %4 : vector<16x1xi1> to vector<16x1xi1>
    %26 = vector.broadcast %25 : vector<16x1xi1> to vector<16x128xi1>
    %27 = vector.shape_cast %5 : vector<1x128xf32> to vector<1x128xf32>
    %28 = vector.broadcast %27 : vector<1x128xf32> to vector<16x128xf32>
    %29 = arith.select %26, %28, %24 : vector<16x128xi1>, vector<16x128xf32>
    %30 = arith.mulf %0, %29 : vector<16x128xf32>
    %cst = arith.constant 0.000000e+00 : f32
    %31 = vector.broadcast %cst : f32 to vector<16x128xf32>
    %32 = arith.maximumf %30, %31 : vector<16x128xf32>
    %33 = arith.truncf %32 : vector<16x128xf32> to vector<16x128xbf16>
    %c0_5 = arith.constant 0 : index
    %c0_6 = arith.constant 0 : index
    %34 = vector.load %arg5[%c0_5, %c0_6] : memref<128x256xbf16, #tpu.memory_space<vmem>>, vector<128x256xbf16>
    %cst_7 = arith.constant dense<0.000000e+00> : vector<16x256xf32>
    %35 = tpu.matmul %33, %34, %cst_7 {dimension_numbers = #tpu.dot_dimension_numbers<[1], [0], [0], [1], [0, 0, 1, 1], [], []>} : vector<16x128xbf16>, vector<128x256xbf16>, vector<16x256xf32> -> vector<16x256xf32>
    %c0_8 = arith.constant 0 : index
    %c0_9 = arith.constant 0 : index
    %36 = vector.load %arg6[%c0_8, %c0_9] : memref<1x256xf32, #tpu.memory_space<vmem>>, vector<1x256xf32>
    %37 = vector.broadcast %36 : vector<1x256xf32> to vector<16x256xf32>
    %38 = arith.addf %35, %37 : vector<16x256xf32>
    %c0_10 = arith.constant 0 : index
    %c0_11 = arith.constant 0 : index
    %39 = vector.load %arg7[%c0_10, %c0_11] : memref<16x256xf32, #tpu.memory_space<vmem>>, vector<16x256xf32>
    tpu.vector_store %arg7[%c0_10, %c0_11], %38 {strides = array<i32>} : memref<16x256xf32, #tpu.memory_space<vmem>>, vector<16x256xf32>,
    return
  }
  func.func @transform_0(%arg0: i32, %arg1: i32) -> (i32, i32) {
    %c0_i32 = arith.constant 0 : i32
    %c0_i32_0 = arith.constant 0 : i32
    return %arg0, %c0_i32 : i32, i32
  }
  func.func @transform_1(%arg0: i32, %arg1: i32) -> (i32, i32) {
    %c0_i32 = arith.constant 0 : i32
    %c0_i32_0 = arith.constant 0 : i32
    return %arg0, %c0_i32 : i32, i32
  }
  func.func @transform_2(%arg0: i32, %arg1: i32) -> (i32, i32) {
    %c0_i32 = arith.constant 0 : i32
    %c0_i32_0 = arith.constant 0 : i32
    %c0_i32_1 = arith.constant 0 : i32
    return %c0_i32, %c0_i32_0 : i32, i32
  }
  func.func @transform_3(%arg0: i32, %arg1: i32) -> (i32, i32) {
    %c0_i32 = arith.constant 0 : i32
    %c0_i32_0 = arith.constant 0 : i32
    return %c0_i32, %arg1 : i32, i32
  }
  func.func @transform_4(%arg0: i32, %arg1: i32) -> (i32, i32) {
    %c0_i32 = arith.constant 0 : i32
    %c0_i32_0 = arith.constant 0 : i32
    return %c0_i32, %arg1 : i32, i32
  }
  func.func @transform_5(%arg0: i32, %arg1: i32) -> (i32, i32) {
    %c0_i32 = arith.constant 0 : i32
    return %arg0, %arg1 : i32, i32
  }
}

</mosaic_0001>

<llo_original>
// kernel: tpu_custom_call.1
$region0: #{tpu_custom_call.1}
  #allocation0 [shape = 'u32[]', space=smem, size = 0x4, offset = 0x4, fixed_abs, tag = 'smem constant byte address 0x4 - core index']
  #allocation1 [shape = 'u32[144,128]{1,0:T(1,128)}', space=vmem, size = 0x12000, scoped, tag = 'internal scratch']
  %s0 = inlined_call_operand.vmem [shape: s32[16,1], index: 0, kind: input, shape index: {}]
  %s1 = inlined_call_operand.vmem [shape: f32[16,128], index: 1, kind: input, shape index: {}]
  %s2 = inlined_call_operand.vmem [shape: f32[4,128], index: 2, kind: input, shape index: {}]
  %s3 = inlined_call_operand.hbm [shape: bf16[128,256], index: 3, kind: input, shape index: {}]
  %s4 = inlined_call_operand.vmem [shape: f32[1,256], index: 4, kind: input, shape index: {}]
  %s5 = inlined_call_operand.hbm [shape: f32[16,256], index: 5, kind: output, shape index: {}]
  %s6 = sld [smem:[#allocation0]]
  $region34: #{tpu_custom_call.1} parent=0
    _
  %s8 = ssub.s32 1, %s6
  %s9 = scalar_select 0, %s8, %s6
  $region1: #{tpu_custom_call.1} parent=0
    #allocation2 [shape = 'u8[65536]{0}', space=vmem, size = 0x10000, scoped, tag = 'input window, operand 3, single buffered']
    #allocation3 [shape = 's32[1]{0}', space=sflag, size = 0x4, scoped, tag = 'scoped memory for tpu_custom_call.1']
    #allocation4 [shape = 's32[1]{0}', space=sflag, size = 0x4, scoped, tag = 'scoped memory for tpu_custom_call.1']
    #allocation5 [shape = 'u8[16384]{0}', space=vmem, size = 0x4000, scoped, tag = 'output window, operand 0, single buffered']
    %10 = vsyncpa [#allocation3], 0
    %11 = vsyncpa [#allocation4], 0
    // Predicated region
    $region2: #{tpu_custom_call.1} parent=1 // pred_check
      _
    $region3: #{tpu_custom_call.1} parent=1 // pred_check_branch
      %13 = sbr.rel (0) target = $region5
    $region4: #{tpu_custom_call.1} parent=1 // pred_region
      _
    $region5: #{tpu_custom_call.1} parent=1 // pred_fallthru
      _
    // Predicated region
    $region6: #{tpu_custom_call.1} parent=1 // pred_check
      _
    $region7: #{tpu_custom_call.1} parent=1 // pred_check_branch
      %15 = sbr.rel (0) target = $region9
    $region8: #{tpu_custom_call.1} parent=1 // pred_region
      _
    $region9: #{tpu_custom_call.1} parent=1 // pred_fallthru
      _
    // Predicated region
    $region10: #{tpu_custom_call.1} parent=1 // pred_check
      _
    $region11: #{tpu_custom_call.1} parent=1 // pred_check_branch
      %17 = sbr.rel (0) target = $region13
    $region12: #{tpu_custom_call.1} parent=1 // pred_region
      _
    $region13: #{tpu_custom_call.1} parent=1 // pred_fallthru
      _
    // Predicated region
    $region14: #{tpu_custom_call.1} parent=1 // pred_check
      _
    $region15: #{tpu_custom_call.1} parent=1 // pred_check_branch
      %19 = sbr.rel (0) target = $region17
    $region16: #{tpu_custom_call.1} parent=1 // pred_region
      %s21 = ssub.s32 2048, 2048
      %22 = vsyncadd [#allocation3], %s21
      %s23 = sshll.u32 [#allocation2], 4
      %s24 = int_to_ptr.vmem [resolvable:$true] %s23
      %29 = dma.hbm_to_vmem [thread:$0]  %s3, 2048, %s24, [#allocation3], 128, 128, 8
    $region17: #{tpu_custom_call.1} parent=1 // pred_fallthru
      _
    // Predicated region
    $region18: #{tpu_custom_call.1} parent=1 // pred_check
      _
    $region19: #{tpu_custom_call.1} parent=1 // pred_check_branch
      %31 = sbr.rel (0) target = $region21
    $region20: #{tpu_custom_call.1} parent=1 // pred_region
      _
    $region21: #{tpu_custom_call.1} parent=1 // pred_fallthru
      _
    // Predicated region
    $region22: #{tpu_custom_call.1} parent=1 // pred_check
      _
    $region23: #{tpu_custom_call.1} parent=1 // pred_check_branch
      %33 = sbr.rel (0) target = $region25
    $region24: #{tpu_custom_call.1} parent=1 // pred_region
      %34 = dma.done [#allocation3], 2048
    $region25: #{tpu_custom_call.1} parent=1 // pred_fallthru
      _
    %v36 = vld [vmem:[%s1] sm:$0xff]
    %v37 = vld [vmem:[%s1 + $0x8] sm:$0xff]
    %v38 = vld [vmem:[%s0] sm:$0xff]
    %v39 = vld [vmem:[%s0 + $0x8] sm:$0xff]
    %v40 = vld [vmem:[%s2] sm:$0xf]
    %vm41 = vcmp.eq.s32.totalorder %v38, 0
    %vm42 = vcmp.eq.s32.totalorder %v39, 0
    %vm43 = vcmp.eq.s32.totalorder %v38, 1
    %vm44 = vcmp.eq.s32.totalorder %v39, 1
    %vm45 = vcmp.eq.s32.totalorder %v38, 2
    %vm46 = vcmp.eq.s32.totalorder %v39, 2
    %v47 = vsel %vm45, 1, 0
    %v48 = vsel %vm46, 1, 0
    %49 = vset.pattern.permute.xlu0 0
    %50 = vperm.xlu0 %49, %v47
    %v51 = vpop.permute.xlu0 %50
    %52 = vset.pattern.permute.xlu0 0
    %53 = vperm.xlu0 %52, %v48
    %v54 = vpop.permute.xlu0 %53
    %vm55 = vcmp.eq.s32.totalorder %v51, 1
    %vm56 = vcmp.eq.s32.totalorder %v54, 1
    %v57 = vlaneseq
    %v58 = vshrl.u32 %v57, 7
    %v59 = vsub.s32 2, %v58
    %v60 = vrot.slane %v40, %v59
    %v61 = vlaneseq
    %v62 = vshrl.u32 %v61, 7
    %v63 = vsub.s32 3, %v62
    %v64 = vrot.slane %v40, %v63
    %v65 = vsel %vm55, %v60, %v64
    %v66 = vsel %vm56, %v60, %v64
    %v67 = vsel %vm43, 1, 0
    %v68 = vsel %vm44, 1, 0
    %69 = vset.pattern.permute.xlu0 0
    %70 = vperm.xlu0 %69, %v67
    %v71 = vpop.permute.xlu0 %70
    %72 = vset.pattern.permute.xlu0 0
    %73 = vperm.xlu0 %72, %v68
    %v74 = vpop.permute.xlu0 %73
    %vm75 = vcmp.eq.s32.totalorder %v71, 1
    %vm76 = vcmp.eq.s32.totalorder %v74, 1
    %v77 = vlaneseq
    %v78 = vshrl.u32 %v77, 7
    %v79 = vsub.s32 1, %v78
    %v80 = vrot.slane %v40, %v79
    %v81 = vsel %vm75, %v80, %v65
    %v82 = vsel %vm76, %v80, %v66
    %v83 = vsel %vm41, 1, 0
    %v84 = vsel %vm42, 1, 0
    %85 = vset.pattern.permute.xlu0 0
    %86 = vperm.xlu0 %85, %v83
    %v87 = vpop.permute.xlu0 %86
    %88 = vset.pattern.permute.xlu0 0
    %89 = vperm.xlu0 %88, %v84
    %v90 = vpop.permute.xlu0 %89
    %vm91 = vcmp.eq.s32.totalorder %v87, 1
    %vm92 = vcmp.eq.s32.totalorder %v90, 1
    %v93 = vlaneseq
    %v94 = vshrl.u32 %v93, 7
    %v95 = vsub.s32 0, %v94
    %v96 = vrot.slane %v40, %v95
    %v97 = vsel %vm91, %v96, %v81
    %v98 = vsel %vm92, %v96, %v82
    %v99 = vmul.f32 %v36, %v97
    %v100 = vmul.f32 %v37, %v98
    %v101 = vmax.f32 %v99, 0.0
    %v102 = vmax.f32 %v100, 0.0
    %v103 = vpack.c.bf16 %v102, %v101
    %v104 = vld [vmem:[#allocation2] sm:$0xff]
    %v105 = vld [vmem:[#allocation2 + $0x8] sm:$0xff]
    %v106 = vld [vmem:[#allocation2 + $0x10] sm:$0xff]
    %v107 = vld [vmem:[#allocation2 + $0x18] sm:$0xff]
    %v108 = vld [vmem:[#allocation2 + $0x20] sm:$0xff]
    %v109 = vld [vmem:[#allocation2 + $0x28] sm:$0xff]
    %v110 = vld [vmem:[#allocation2 + $0x30] sm:$0xff]
    %v111 = vld [vmem:[#allocation2 + $0x38] sm:$0xff]
    %v112 = vld [vmem:[#allocation2 + $0x40] sm:$0xff]
    %v113 = vld [vmem:[#allocation2 + $0x48] sm:$0xff]
    %v114 = vld [vmem:[#allocation2 + $0x50] sm:$0xff]
    %v115 = vld [vmem:[#allocation2 + $0x58] sm:$0xff]
    %v116 = vld [vmem:[#allocation2 + $0x60] sm:$0xff]
    %v117 = vld [vmem:[#allocation2 + $0x68] sm:$0xff]
    %v118 = vld [vmem:[#allocation2 + $0x70] sm:$0xff]
    %v119 = vld [vmem:[#allocation2 + $0x78] sm:$0xff]
    %v120 = vld [vmem:[%s4] sm:$0x3]
    %v122 = vlaneseq
    %v123 = vshrl.u32 %v122, 7
    %v124 = vsub.s32 0, %v123
    %v125 = vrot.slane %v120, %v124
    %v126 = vlaneseq
    %v127 = vshrl.u32 %v126, 7
    %v128 = vsub.s32 1, %v127
    %v129 = vrot.slane %v120, %v128
    %v148 = vunpack.c.l.b16 %v104
    %v149 = vunpack.c.h.b16 %v104
    %v150 = vunpack.c.l.b16 %v105
    %v151 = vunpack.c.h.b16 %v105
    %v152 = vunpack.c.l.b16 %v106
    %v153 = vunpack.c.h.b16 %v106
    %v154 = vunpack.c.l.b16 %v107
    %v155 = vunpack.c.h.b16 %v107
    %v156 = vunpack.c.l.b16 %v108
    %v157 = vunpack.c.h.b16 %v108
    %v158 = vunpack.c.l.b16 %v109
    %v159 = vunpack.c.h.b16 %v109
    %v160 = vunpack.c.l.b16 %v110
    %v161 = vunpack.c.h.b16 %v110
    %v162 = vunpack.c.l.b16 %v111
    %v163 = vunpack.c.h.b16 %v111
    %v164 = vunpack.c.l.b16 %v112
    %v165 = vunpack.c.h.b16 %v112
    %v166 = vunpack.c.l.b16 %v113
    %v167 = vunpack.c.h.b16 %v113
    %v168 = vunpack.c.l.b16 %v114
    %v169 = vunpack.c.h.b16 %v114
    %v170 = vunpack.c.l.b16 %v115
    %v171 = vunpack.c.h.b16 %v115
    %v172 = vunpack.c.l.b16 %v116
    %v173 = vunpack.c.h.b16 %v116
    %v174 = vunpack.c.l.b16 %v117
    %v175 = vunpack.c.h.b16 %v117
    %v176 = vunpack.c.l.b16 %v118
    %v177 = vunpack.c.h.b16 %v118
    %v178 = vunpack.c.l.b16 %v119
    %v179 = vunpack.c.h.b16 %v119
    %v180 = vpack.c.b16 %v150, %v148
    %v181 = vpack.c.b16 %v151, %v149
    %v182 = vpack.c.b16 %v154, %v152
    %v183 = vpack.c.b16 %v155, %v153
    %v184 = vpack.c.b16 %v158, %v156
    %v185 = vpack.c.b16 %v159, %v157
    %v186 = vpack.c.b16 %v162, %v160
    %v187 = vpack.c.b16 %v163, %v161
    %v188 = vpack.c.b16 %v166, %v164
    %v189 = vpack.c.b16 %v167, %v165
    %v190 = vpack.c.b16 %v170, %v168
    %v191 = vpack.c.b16 %v171, %v169
    %v192 = vpack.c.b16 %v174, %v172
    %v193 = vpack.c.b16 %v175, %v173
    %v194 = vpack.c.b16 %v178, %v176
    %v195 = vpack.c.b16 %v179, %v177
    %212 = vmatprep.subr.bf16.mxu0 %v181
    %213 = vmatpush1.bf16.msra.mxu0 %v180
    %214 = vmatprep.subr.bf16.mxu0 %v183
    %215 = vmatpush1.bf16.msra.mxu0 %v182
    %216 = vmatprep.subr.bf16.mxu0 %v185
    %217 = vmatpush1.bf16.msra.mxu0 %v184
    %218 = vmatprep.subr.bf16.mxu0 %v187
    %219 = vmatpush1.bf16.msra.mxu0 %v186
    %220 = vmatprep.subr.bf16.mxu0 %v189
    %221 = vmatpush1.bf16.msra.mxu0 %v188
    %222 = vmatprep.subr.bf16.mxu0 %v191
    %223 = vmatpush1.bf16.msra.mxu0 %v190
    %224 = vmatprep.subr.bf16.mxu0 %v193
    %225 = vmatpush1.bf16.msra.mxu0 %v192
    %226 = vmatprep.subr.bf16.mxu0 %v195
    %227 = vmatpush1.bf16.msra.mxu0 %v194
    %228 = vmatprep.subr.bf16.mxu0 0
    %229 = vmatpush1.bf16.msra.mxu0 0
    %230 = vmatprep.subr.bf16.mxu0 0
    %231 = vmatpush1.bf16.msra.mxu0 0
    %232 = vmatprep.subr.bf16.mxu0 0
    %233 = vmatpush1.bf16.msra.mxu0 0
    %234 = vmatprep.subr.bf16.mxu0 0
    %235 = vmatpush1.bf16.msra.mxu0 0
    %236 = vmatprep.subr.bf16.mxu0 0
    %237 = vmatpush1.bf16.msra.mxu0 0
    %238 = vmatprep.subr.bf16.mxu0 0
    %239 = vmatpush1.bf16.msra.mxu0 0
    %240 = vmatprep.subr.bf16.mxu0 0
    %241 = vmatpush1.bf16.msra.mxu0 0
    %242 = vmatprep.subr.bf16.mxu0 0
    %243 = vmatpush1.bf16.msra.mxu0 0
    %244 = vmatprep.mubr.bf16.mxu0 0
    %245 = vmatmul.mubr.bf16.gmra.mrb[0].mxu0 %v103
    %v246 = vpop.f32.mrb[0].mxu0
    %v247 = vadd.f32 %v125, %v246
    %v248 = vpop.f32.mrb[0].mxu0
    %v249 = vadd.f32 %v129, %v248
    %v250 = vpop.f32.mrb[0].mxu0
    %v251 = vadd.f32 %v125, %v250
    %v252 = vpop.f32.mrb[0].mxu0
    %v253 = vadd.f32 %v129, %v252
    %254 = vdwg.mxu0
    %255 = vst [vmem:[#allocation5] sm:$0xff] %v247
    %256 = vst [vmem:[#allocation5 + $0x8] sm:$0xff] %v249
    %257 = vst [vmem:[#allocation5 + $0x10] sm:$0xff] %v251
    %258 = vst [vmem:[#allocation5 + $0x18] sm:$0xff] %v253
    // Predicated region
    $region26: #{tpu_custom_call.1} parent=1 // pred_check
      _
    $region27: #{tpu_custom_call.1} parent=1 // pred_check_branch
      %260 = sbr.rel (0) target = $region29
    $region28: #{tpu_custom_call.1} parent=1 // pred_region
      %s262 = ssub.s32 512, 512
      %263 = vsyncadd [#allocation4], %s262
      %s264 = sshll.u32 [#allocation5], 4
      %s265 = int_to_ptr.vmem [resolvable:$true] %s264
      %270 = dma.vmem_to_hbm [thread:$0]  %s265, 512, %s5, [#allocation4], 256, 256, 16
    $region29: #{tpu_custom_call.1} parent=1 // pred_fallthru
      _
    // Predicated region
    $region30: #{tpu_custom_call.1} parent=1 // pred_check
      _
    $region31: #{tpu_custom_call.1} parent=1 // pred_check_branch
      %272 = sbr.rel (0) target = $region33
    $region32: #{tpu_custom_call.1} parent=1 // pred_region
      %273 = dma.done [#allocation4], 512
    $region33: #{tpu_custom_call.1} parent=1 // pred_fallthru
      _
    %274 = vsyncpa [#allocation3], 1
    %275 = vsyncpa [#allocation4], 1

</llo_original>
